<compile_context>
chip_gen: v7x
topology: tpu7x:2x2x1
jax: 0.10.0
libtpu: 0.0.40
codegen_flags: <defaults>
</compile_context>

<pallas_src>
from functools import partial

import numpy as np
import jax
import jax.numpy as jnp
from jax.experimental import pallas as pl
from jax.experimental.pallas import tpu as pltpu

LANES = 128                       # lane width of the fc2 / output section
C1, C2, HID, OUT = 16, 32, 64, 2  # StockCNN fixed channel sizes


def _up8(n):   return (n + 7) // 8 * 8
def _up16(n):  return (n + 15) // 16 * 16
def _up128(n): return (n + 127) // 128 * 128


# -----------------------------------------------------------------------------
# Packed-parameter layout: one (rows, lanes) bf16 buffer holding the Toeplitz-
# expanded conv weights, the fc weights and all (pre-tiled) biases.  Sections
# start at multiples of 16 rows (bf16 sublane packing) and every lane slice used
# in the kernel ends at a multiple of 128, so no sublane/lane relayout happens
# in-kernel.
# -----------------------------------------------------------------------------
def _packed_layout(input_channels, window_size, k1=3, k2=3):
    Cin, W = input_channels, window_size
    L1 = W - k1 + 1
    L2 = L1 - k2 + 1
    XW = W * Cin                    # lane width of the flattened input
    N1, N2 = L1 * C1, L2 * C2       # flat conv1 / conv2 output widths
    N1P, N2P = _up128(N1), _up128(N2)
    HIDP = _up128(HID)
    lanes = max(N1P, N2P, HIDP, LANES)

    sections = (("w1", XW), ("b1", 1),      # conv1 Toeplitz + tiled bias
                ("w2", N1P), ("b2", 1),     # conv2 Toeplitz + tiled bias
                ("fw1", N2P), ("fb1", 1),   # fc1 (flatten-order folded in)
                ("fw2", HIDP), ("fb2", 1))  # fc2 (lane-padded to 128)
    offs, r = {}, 0
    for name, nrows in sections:
        offs[name] = r
        r += _up16(nrows)
    dims = dict(Cin=Cin, W=W, L1=L1, L2=L2, XW=XW, N1=N1, N2=N2,
                N1P=N1P, N2P=N2P, HIDP=HIDP, lanes=lanes)
    return offs, r, dims


# -----------------------------------------------------------------------------
# One-time parameter re-layout (hoisted out of the per-forward path).
# -----------------------------------------------------------------------------
def pack_params(params, input_channels, window_size, k1=3, k2=3):
    offs, rows, d = _packed_layout(input_channels, window_size, k1, k2)
    Cin, W, L1, L2 = d['Cin'], d['W'], d['L1'], d['L2']

    w1 = np.asarray(params['conv1_w'], np.float32)   # (C1, Cin, k1)
    w2 = np.asarray(params['conv2_w'], np.float32)   # (C2, C1, k2)

    # Block-Toeplitz conv1: row (t+k)*Cin + i, col t*C1 + c  <-  w1[c, i, k]
    W1T = np.zeros((d['XW'], d['N1']), np.float32)
    for t in range(L1):
        for k in range(k1):
            W1T[(t + k) * Cin:(t + k + 1) * Cin, t * C1:(t + 1) * C1] = w1[:, :, k].T

    # Block-Toeplitz conv2: row (t+k)*C1 + j, col t*C2 + c  <-  w2[c, j, k]
    # (rows >= N1 stay zero so h1's zero-padded lanes contribute nothing)
    W2T = np.zeros((d['N1P'], d['N2']), np.float32)
    for t in range(L2):
        for k in range(k2):
            W2T[(t + k) * C1:(t + k + 1) * C1, t * C2:(t + 1) * C2] = w2[:, :, k].T

    # fc1: PyTorch flatten is channel-major (c*L2 + t); our conv2 output lanes
    # are time-major (t*C2 + c), so fold the permutation into the weight rows.
    fw1 = (np.asarray(params['fc1_w'], np.float32)
           .reshape(HID, C2, L2).transpose(2, 1, 0).reshape(L2 * C2, HID))
    fw2 = np.asarray(params['fc2_w'], np.float32).T                 # (HID, OUT)

    buf = np.zeros((rows, d['lanes']), np.float32)
    buf[offs['w1']:offs['w1'] + d['XW'], :d['N1']] = W1T
    buf[offs['b1'], :d['N1']] = np.tile(np.asarray(params['conv1_b'], np.float32), L1)
    buf[offs['w2']:offs['w2'] + d['N1P'], :d['N2']] = W2T
    buf[offs['b2'], :d['N2']] = np.tile(np.asarray(params['conv2_b'], np.float32), L2)
    buf[offs['fw1']:offs['fw1'] + L2 * C2, :HID] = fw1
    buf[offs['fb1'], :HID] = np.asarray(params['fc1_b'], np.float32)
    buf[offs['fw2']:offs['fw2'] + HID, :OUT] = fw2                  # lanes >= OUT stay 0
    buf[offs['fb2'], :OUT] = np.asarray(params['fc2_b'], np.float32)
    return jnp.asarray(buf, dtype=jnp.bfloat16)


# -----------------------------------------------------------------------------
# Pallas kernel: full forward pass for one batch tile — four lane-dense matmuls.
# bf16 MXU operands, fp32 accumulation, fp32 VPU bias/ReLU (v5e-safe),
# bf16 persistent intermediates.
# -----------------------------------------------------------------------------
def _stock_cnn_kernel(x_ref, p_ref, out_ref, *, offs, d):
    XW, N1P, N2P, HIDP = d['XW'], d['N1P'], d['N2P'], d['HIDP']
    f32 = jnp.float32

    x = x_ref[...]                                                  # (TB, XW) bf16

    # conv1 + ReLU
    w1 = p_ref[offs['w1']:offs['w1'] + XW, :N1P]
    b1 = p_ref[offs['b1']:offs['b1'] + 1, :N1P].astype(f32)
    h1 = jnp.maximum(jnp.dot(x, w1, preferred_element_type=f32) + b1, 0.0)
    h1 = h1.astype(jnp.bfloat16)                                    # (TB, N1P)

    # conv2 + ReLU
    w2 = p_ref[offs['w2']:offs['w2'] + N1P, :N2P]
    b2 = p_ref[offs['b2']:offs['b2'] + 1, :N2P].astype(f32)
    h2 = jnp.maximum(jnp.dot(h1, w2, preferred_element_type=f32) + b2, 0.0)
    h2 = h2.astype(jnp.bfloat16)                                    # (TB, N2P)

    # fc1 + ReLU (single K = N2P contraction; flatten order folded into weights)
    fw1 = p_ref[offs['fw1']:offs['fw1'] + N2P, :HIDP]
    fb1 = p_ref[offs['fb1']:offs['fb1'] + 1, :HIDP].astype(f32)
    h3 = jnp.maximum(jnp.dot(h2, fw1, preferred_element_type=f32) + fb1, 0.0)
    h3 = h3.astype(jnp.bfloat16)                                    # (TB, HIDP)

    # fc2: lane-dense (128-wide zero-padded) output -> unmasked stores
    fw2 = p_ref[offs['fw2']:offs['fw2'] + HIDP, :LANES]
    fb2 = p_ref[offs['fb2']:offs['fb2'] + 1, :LANES].astype(f32)
    out = jnp.dot(h3, fw2, preferred_element_type=f32) + fb2
    out_ref[...] = out.astype(out_ref.dtype)


# -----------------------------------------------------------------------------
# Batch tiling: multiples of 8 sublanes, capped at batch_tile, and >= 2 tiles
# whenever B > 8 so v7x's 2 TensorCores both get work.
# -----------------------------------------------------------------------------
def _batch_tiling(B, batch_tile):
    half = _up8((_up8(B) + 1) // 2)
    TB = max(8, min(_up8(batch_tile), half))
    Bp = (B + TB - 1) // TB * TB
    return TB, Bp


# -----------------------------------------------------------------------------
# Wrapper: batch-tiled pallas_call.  Takes the pre-packed parameter buffer.
# -----------------------------------------------------------------------------
def stock_cnn_forward(x, packed_params, *, input_channels, window_size,
                      k1=3, k2=3, batch_tile=1024):
    B, W, Cin = x.shape
    assert W == window_size and Cin == input_channels
    offs, rows, d = _packed_layout(input_channels, window_size, k1, k2)

    TB, Bp = _batch_tiling(B, batch_tile)

    # Lane-dense bf16 input (bf16 is what the first matmul consumes anyway).
    x2 = x.reshape(B, d['XW']).astype(jnp.bfloat16)
    if Bp != B:
        x2 = jnp.pad(x2, ((0, Bp - B), (0, 0)))

    kernel = partial(_stock_cnn_kernel, offs=offs, d=d)
    out = pl.pallas_call(
        kernel,
        out_shape=jax.ShapeDtypeStruct((Bp, LANES), jnp.bfloat16),
        grid=(Bp // TB,),
        in_specs=[
            pl.BlockSpec((TB, d['XW']), lambda i: (i, 0)),         # pipelined x tiles
            pl.BlockSpec((rows, d['lanes']), lambda i: (0, 0)),    # weights resident
        ],
        out_specs=pl.BlockSpec((TB, LANES), lambda i: (i, 0)),
        compiler_params=pltpu.CompilerParams(
            dimension_semantics=("parallel",)),   # v7x: batch tiles across 2 TCs
    )(x2, packed_params)
    return out[:B, :OUT].astype(jnp.float32)


# -----------------------------------------------------------------------------
# Pure-JAX reference written in PyTorch (NCW, channel-major flatten) conventions
# -----------------------------------------------------------------------------
def torch_style_reference(x, params):
    xt = jnp.transpose(x, (0, 2, 1))  # (B, Cin, W)  == x.permute(0, 2, 1)

    def conv1d(inp, w, b):
        Bc, Ci, Wi = inp.shape
        Co, _, K = w.shape
        L = Wi - K + 1
        out = jnp.zeros((Bc, Co, L), jnp.float32)
        for k in range(K):
            out = out + jnp.einsum('biw,oi->bow', inp[:, :, k:k + L], w[:, :, k])
        return out + b[None, :, None]

    h1 = jax.nn.relu(conv1d(xt, params['conv1_w'], params['conv1_b']))
    h2 = jax.nn.relu(conv1d(h1, params['conv2_w'], params['conv2_b']))
    flat = h2.reshape(h2.shape[0], -1)                        # channel-major flatten
    h3 = jax.nn.relu(flat @ params['fc1_w'].T + params['fc1_b'])
    return h3 @ params['fc2_w'].T + params['fc2_b']


def init_params(key, input_channels, window_size, k1=3, k2=3):
    L2 = window_size - (k1 - 1) - (k2 - 1)
    ks = jax.random.split(key, 8)
    s = 0.1
    return {
        'conv1_w': s * jax.random.normal(ks[0], (16, input_channels, k1), jnp.float32),
        'conv1_b': s * jax.random.normal(ks[1], (16,), jnp.float32),
        'conv2_w': s * jax.random.normal(ks[2], (32, 16, k2), jnp.float32),
        'conv2_b': s * jax.random.normal(ks[3], (32,), jnp.float32),
        'fc1_w':   s * jax.random.normal(ks[4], (64, 32 * L2), jnp.float32),
        'fc1_b':   s * jax.random.normal(ks[5], (64,), jnp.float32),
        'fc2_w':   s * jax.random.normal(ks[6], (2, 64), jnp.float32),
        'fc2_b':   s * jax.random.normal(ks[7], (2,), jnp.float32),
    }


if __name__ == "__main__":
    window_size, input_channels = 16, 4

    key = jax.random.PRNGKey(0)
    pkey, xkey, xkey2 = jax.random.split(key, 3)
    params = init_params(pkey, input_channels, window_size)

    # Parameter re-layout is done ONCE here (not per forward call).
    packed = jax.block_until_ready(pack_params(params, input_channels, window_size))

    fwd = jax.jit(partial(stock_cnn_forward,
                          input_channels=input_channels, window_size=window_size))

    ok = True
    # Check 1: tiny batch (single tile).
    x = jax.random.normal(xkey, (2, window_size, input_channels), jnp.float32)
    out = jax.block_until_ready(fwd(x, packed))
    ref = jax.block_until_ready(torch_style_reference(x, params))
    assert out.shape == (2, 2), out.shape
    if not np.allclose(np.asarray(out), np.asarray(ref), rtol=2e-2, atol=2e-2):
        ok = False
        print("MISMATCH(B=2)", float(np.max(np.abs(np.asarray(out) - np.asarray(ref)))))

    # Check 2: non-multiple-of-8 batch -> exercises padding + a 2-tile grid.
    x2 = jax.random.normal(xkey2, (12, window_size, input_channels), jnp.float32)
    out2 = jax.block_until_ready(fwd(x2, packed))
    ref2 = jax.block_until_ready(torch_style_reference(x2, params))
    assert out2.shape == (12, 2), out2.shape
    if not np.allclose(np.asarray(out2), np.asarray(ref2), rtol=2e-2, atol=2e-2):
        ok = False
        print("MISMATCH(B=12)", float(np.max(np.abs(np.asarray(out2) - np.asarray(ref2)))))

    if ok:
        print("KERNEL_OK")
</pallas_src>

<mosaic_0001>
module attributes {stable_mosaic.version = 11 : i64} {
  func.func @_stock_cnn_kernel(%arg0: i32, %arg1: memref<8x64xbf16, #tpu.memory_space<vmem>>, %arg2: memref<896x384xbf16, #tpu.memory_space<vmem>>, %arg3: memref<8x128xbf16, #tpu.memory_space<vmem>>) attributes {dimension_semantics = [#tpu.dimension_semantics<parallel>], iteration_bounds = array<i64: 1>, scalar_prefetch = 0 : i64, scratch_operands = 0 : i64, tpu.core_type = #tpu.core_type<tc>, window_params = [{transform_indices = @transform_0, window_bounds = array<i64: 8, 64>}, {pipeline_mode = #tpu.pipeline_mode<synchronous>, transform_indices = @transform_1, window_bounds = array<i64: 896, 384>}, {transform_indices = @transform_2, window_bounds = array<i64: 8, 128>}]} {
    %c0 = arith.constant 0 : index
    %c0_0 = arith.constant 0 : index
    %0 = vector.load %arg1[%c0, %c0_0] : memref<8x64xbf16, #tpu.memory_space<vmem>>, vector<8x64xbf16>
    %c0_1 = arith.constant 0 : index
    %c0_2 = arith.constant 0 : index
    %1 = vector.load %arg2[%c0_1, %c0_2] : memref<896x384xbf16, #tpu.memory_space<vmem>>, vector<64x256xbf16>
    %c64 = arith.constant 64 : index
    %c0_3 = arith.constant 0 : index
    %2 = vector.load %arg2[%c64, %c0_3] : memref<896x384xbf16, #tpu.memory_space<vmem>>, vector<1x256xbf16>
    %3 = arith.extf %2 : vector<1x256xbf16> to vector<1x256xf32>
    %cst = arith.constant dense<0.000000e+00> : vector<8x256xf32>
    %4 = tpu.matmul %0, %1, %cst {dimension_numbers = #tpu.dot_dimension_numbers<[1], [0], [0], [1], [0, 0, 1, 1], [], []>} : vector<8x64xbf16>, vector<64x256xbf16>, vector<8x256xf32> -> vector<8x256xf32>
    %5 = vector.broadcast %3 : vector<1x256xf32> to vector<8x256xf32>
    %6 = arith.addf %4, %5 : vector<8x256xf32>
    %cst_4 = arith.constant 0.000000e+00 : f32
    %7 = vector.broadcast %cst_4 : f32 to vector<8x256xf32>
    %8 = arith.maximumf %6, %7 : vector<8x256xf32>
    %9 = arith.truncf %8 : vector<8x256xf32> to vector<8x256xbf16>
    %c80 = arith.constant 80 : index
    %c0_5 = arith.constant 0 : index
    %10 = vector.load %arg2[%c80, %c0_5] : memref<896x384xbf16, #tpu.memory_space<vmem>>, vector<256x384xbf16>
    %c336 = arith.constant 336 : index
    %c0_6 = arith.constant 0 : index
    %11 = vector.load %arg2[%c336, %c0_6] : memref<896x384xbf16, #tpu.memory_space<vmem>>, vector<1x384xbf16>
    %12 = arith.extf %11 : vector<1x384xbf16> to vector<1x384xf32>
    %cst_7 = arith.constant dense<0.000000e+00> : vector<8x384xf32>
    %13 = tpu.matmul %9, %10, %cst_7 {dimension_numbers = #tpu.dot_dimension_numbers<[1], [0], [0], [1], [0, 0, 1, 1], [], []>} : vector<8x256xbf16>, vector<256x384xbf16>, vector<8x384xf32> -> vector<8x384xf32>
    %14 = vector.broadcast %12 : vector<1x384xf32> to vector<8x384xf32>
    %15 = arith.addf %13, %14 : vector<8x384xf32>
    %cst_8 = arith.constant 0.000000e+00 : f32
    %16 = vector.broadcast %cst_8 : f32 to vector<8x384xf32>
    %17 = arith.maximumf %15, %16 : vector<8x384xf32>
    %18 = arith.truncf %17 : vector<8x384xf32> to vector<8x384xbf16>
    %c352 = arith.constant 352 : index
    %c0_9 = arith.constant 0 : index
    %19 = vector.load %arg2[%c352, %c0_9] : memref<896x384xbf16, #tpu.memory_space<vmem>>, vector<384x128xbf16>
    %c736 = arith.constant 736 : index
    %c0_10 = arith.constant 0 : index
    %20 = vector.load %arg2[%c736, %c0_10] : memref<896x384xbf16, #tpu.memory_space<vmem>>, vector<1x128xbf16>
    %21 = arith.extf %20 : vector<1x128xbf16> to vector<1x128xf32>
    %cst_11 = arith.constant dense<0.000000e+00> : vector<8x128xf32>
    %22 = tpu.matmul %18, %19, %cst_11 {dimension_numbers = #tpu.dot_dimension_numbers<[1], [0], [0], [1], [0, 0, 1, 1], [], []>} : vector<8x384xbf16>, vector<384x128xbf16>, vector<8x128xf32> -> vector<8x128xf32>
    %23 = vector.broadcast %21 : vector<1x128xf32> to vector<8x128xf32>
    %24 = arith.addf %22, %23 : vector<8x128xf32>
    %cst_12 = arith.constant 0.000000e+00 : f32
    %25 = vector.broadcast %cst_12 : f32 to vector<8x128xf32>
    %26 = arith.maximumf %24, %25 : vector<8x128xf32>
    %27 = arith.truncf %26 : vector<8x128xf32> to vector<8x128xbf16>
    %c752 = arith.constant 752 : index
    %c0_13 = arith.constant 0 : index
    %28 = vector.load %arg2[%c752, %c0_13] : memref<896x384xbf16, #tpu.memory_space<vmem>>, vector<128x128xbf16>
    %c880 = arith.constant 880 : index
    %c0_14 = arith.constant 0 : index
    %29 = vector.load %arg2[%c880, %c0_14] : memref<896x384xbf16, #tpu.memory_space<vmem>>, vector<1x128xbf16>
    %30 = arith.extf %29 : vector<1x128xbf16> to vector<1x128xf32>
    %cst_15 = arith.constant dense<0.000000e+00> : vector<8x128xf32>
    %31 = tpu.matmul %27, %28, %cst_15 {dimension_numbers = #tpu.dot_dimension_numbers<[1], [0], [0], [1], [0, 0, 1, 1], [], []>} : vector<8x128xbf16>, vector<128x128xbf16>, vector<8x128xf32> -> vector<8x128xf32>
    %32 = vector.broadcast %30 : vector<1x128xf32> to vector<8x128xf32>
    %33 = arith.addf %31, %32 : vector<8x128xf32>
    %34 = arith.truncf %33 : vector<8x128xf32> to vector<8x128xbf16>
    %c0_16 = arith.constant 0 : index
    %c0_17 = arith.constant 0 : index
    %35 = vector.load %arg3[%c0_16, %c0_17] : memref<8x128xbf16, #tpu.memory_space<vmem>>, vector<8x128xbf16>
    tpu.vector_store %arg3[%c0_16, %c0_17], %34 {strides = array<i32>} : memref<8x128xbf16, #tpu.memory_space<vmem>>, vector<8x128xbf16>,
    return
  }
  func.func @transform_0(%arg0: i32) -> (i32, i32) {
    %c0_i32 = arith.constant 0 : i32
    %c0_i32_0 = arith.constant 0 : i32
    return %arg0, %c0_i32 : i32, i32
  }
  func.func @transform_1(%arg0: i32) -> (i32, i32) {
    %c0_i32 = arith.constant 0 : i32
    %c0_i32_0 = arith.constant 0 : i32
    %c0_i32_1 = arith.constant 0 : i32
    return %c0_i32, %c0_i32_0 : i32, i32
  }
  func.func @transform_2(%arg0: i32) -> (i32, i32) {
    %c0_i32 = arith.constant 0 : i32
    %c0_i32_0 = arith.constant 0 : i32
    return %arg0, %c0_i32 : i32, i32
  }
}

</mosaic_0001>

<llo_original>
// kernel: stock_cnn_forward.1
$region0: #{stock_cnn_forward.1}
  #allocation0 [shape = 'u32[]', space=smem, size = 0x4, offset = 0x4, fixed_abs, tag = 'smem constant byte address 0x4 - core index']
  #allocation1 [shape = 'u32[144,128]{1,0:T(1,128)}', space=vmem, size = 0x12000, scoped, tag = 'internal scratch']
  %s0 = inlined_call_operand.vmem [shape: bf16[8,64], index: 0, kind: input, shape index: {}]
  %s1 = inlined_call_operand.hbm [shape: bf16[896,384], index: 1, kind: input, shape index: {}]
  %s2 = inlined_call_operand.vmem [shape: bf16[8,128], index: 2, kind: output, shape index: {}]
  %s3 = sld [smem:[#allocation0]]
  $region22: #{stock_cnn_forward.1} parent=0
    _
  %s5 = ssub.s32 1, %s3
  %s6 = scalar_select 0, %s5, %s3
  $region1: #{stock_cnn_forward.1} parent=0
    #allocation2 [shape = 'u8[688128]{0}', space=vmem, size = 0xa8000, scoped, tag = 'input window, operand 1, single buffered']
    #allocation3 [shape = 's32[1]{0}', space=sflag, size = 0x4, scoped, tag = 'scoped memory for stock_cnn_forward.1']
    %7 = vsyncpa [#allocation3], 0
    // Predicated region
    $region2: #{stock_cnn_forward.1} parent=1 // pred_check
      _
    $region3: #{stock_cnn_forward.1} parent=1 // pred_check_branch
      %9 = sbr.rel (0) target = $region5
    $region4: #{stock_cnn_forward.1} parent=1 // pred_region
      _
    $region5: #{stock_cnn_forward.1} parent=1 // pred_fallthru
      _
    // Predicated region
    $region6: #{stock_cnn_forward.1} parent=1 // pred_check
      _
    $region7: #{stock_cnn_forward.1} parent=1 // pred_check_branch
      %11 = sbr.rel (0) target = $region9
    $region8: #{stock_cnn_forward.1} parent=1 // pred_region
      %s13 = ssub.s32 21504, 21504
      %14 = vsyncadd [#allocation3], %s13
      %s15 = sshll.u32 [#allocation2], 4
      %s16 = int_to_ptr.vmem [resolvable:$true] %s15
      %21 = dma.hbm_to_vmem [thread:$0]  %s1, 21504, %s16, [#allocation3], 192, 192, 12
    $region9: #{stock_cnn_forward.1} parent=1 // pred_fallthru
      _
    // Predicated region
    $region10: #{stock_cnn_forward.1} parent=1 // pred_check
      _
    $region11: #{stock_cnn_forward.1} parent=1 // pred_check_branch
      %23 = sbr.rel (0) target = $region13
    $region12: #{stock_cnn_forward.1} parent=1 // pred_region
      %24 = dma.done [#allocation3], 21504
    $region13: #{stock_cnn_forward.1} parent=1 // pred_fallthru
      _
    %v26 = vld [vmem:[%s0] sm:$0xf]
    %v27 = vld [vmem:[#allocation2] sm:$0xff]
    %v28 = vld [vmem:[#allocation2 + $0xc] sm:$0xff]
    %v29 = vld [vmem:[#allocation2 + $0x18] sm:$0xff]
    %v30 = vld [vmem:[#allocation2 + $0x24] sm:$0xff]
    %v31 = vld [vmem:[#allocation2 + $0x30] sm:$0xff]
    %v32 = vld [vmem:[#allocation2 + $0x3c] sm:$0xff]
    %v33 = vld [vmem:[#allocation2 + $0x48] sm:$0xff]
    %v34 = vld [vmem:[#allocation2 + $0x54] sm:$0xff]
    %v35 = vld [vmem:[#allocation2 + $0x60] sm:$0x11]
    %v36 = vunpack.c.l.bf16 %v35
    %v37 = vunpack.c.h.bf16 %v35
    %v38 = vlaneseq
    %v39 = vshrl.u32 %v38, 7
    %v40 = vsub.s32 0, %v39
    %v41 = vrot.slane %v36, %v40
    %v42 = vlaneseq
    %v43 = vshrl.u32 %v42, 7
    %v44 = vsub.s32 0, %v43
    %v45 = vrot.slane %v37, %v44
    %v54 = vunpack.c.l.b16 %v27
    %v55 = vunpack.c.h.b16 %v27
    %v56 = vunpack.c.l.b16 %v28
    %v57 = vunpack.c.h.b16 %v28
    %v58 = vunpack.c.l.b16 %v29
    %v59 = vunpack.c.h.b16 %v29
    %v60 = vunpack.c.l.b16 %v30
    %v61 = vunpack.c.h.b16 %v30
    %v62 = vunpack.c.l.b16 %v31
    %v63 = vunpack.c.h.b16 %v31
    %v64 = vunpack.c.l.b16 %v32
    %v65 = vunpack.c.h.b16 %v32
    %v66 = vunpack.c.l.b16 %v33
    %v67 = vunpack.c.h.b16 %v33
    %v68 = vunpack.c.l.b16 %v34
    %v69 = vunpack.c.h.b16 %v34
    %v70 = vpack.c.b16 %v56, %v54
    %v71 = vpack.c.b16 %v57, %v55
    %v72 = vpack.c.b16 %v60, %v58
    %v73 = vpack.c.b16 %v61, %v59
    %v74 = vpack.c.b16 %v64, %v62
    %v75 = vpack.c.b16 %v65, %v63
    %v76 = vpack.c.b16 %v68, %v66
    %v77 = vpack.c.b16 %v69, %v67
    %vm86 = vcmask 523264
    %v88 = vsel %vm86, %v26, 0
    %90 = vmatprep.subr.bf16.mxu0 %v71
    %91 = vmatpush1.bf16.msra.mxu0 %v70
    %92 = vmatprep.subr.bf16.mxu0 %v73
    %93 = vmatpush1.bf16.msra.mxu0 %v72
    %94 = vmatprep.subr.bf16.mxu0 %v75
    %95 = vmatpush1.bf16.msra.mxu0 %v74
    %96 = vmatprep.subr.bf16.mxu0 %v77
    %97 = vmatpush1.bf16.msra.mxu0 %v76
    %98 = vmatprep.subr.bf16.mxu0 0
    %99 = vmatpush1.bf16.msra.mxu0 0
    %100 = vmatprep.subr.bf16.mxu0 0
    %101 = vmatpush1.bf16.msra.mxu0 0
    %102 = vmatprep.subr.bf16.mxu0 0
    %103 = vmatpush1.bf16.msra.mxu0 0
    %104 = vmatprep.subr.bf16.mxu0 0
    %105 = vmatpush1.bf16.msra.mxu0 0
    %106 = vmatprep.subr.bf16.mxu0 0
    %107 = vmatpush1.bf16.msra.mxu0 0
    %108 = vmatprep.subr.bf16.mxu0 0
    %109 = vmatpush1.bf16.msra.mxu0 0
    %110 = vmatprep.subr.bf16.mxu0 0
    %111 = vmatpush1.bf16.msra.mxu0 0
    %112 = vmatprep.subr.bf16.mxu0 0
    %113 = vmatpush1.bf16.msra.mxu0 0
    %114 = vmatprep.subr.bf16.mxu0 0
    %115 = vmatpush1.bf16.msra.mxu0 0
    %116 = vmatprep.subr.bf16.mxu0 0
    %117 = vmatpush1.bf16.msra.mxu0 0
    %118 = vmatprep.subr.bf16.mxu0 0
    %119 = vmatpush1.bf16.msra.mxu0 0
    %120 = vmatprep.subr.bf16.mxu0 0
    %121 = vmatpush1.bf16.msra.mxu0 0
    %122 = vmatprep.mubr.bf16.mxu0 0
    %123 = vmatmul.mubr.bf16.gmra.mrb[0].mxu0 %v88
    %v124 = vpop.f32.mrb[0].mxu0
    %v125 = vadd.f32 %v41, %v124
    %v126 = vpop.f32.mrb[0].mxu0
    %v127 = vadd.f32 %v45, %v126
    %v128 = vpop.f32.mrb[0].mxu0
    %v129 = vpop.f32.mrb[0].mxu0
    %130 = vdwg.mxu0
    %v131 = vmax.f32 %v125, 0.0
    %v132 = vmax.f32 %v127, 0.0
    %v133 = vpack.c.bf16 %v131, %v131
    %v134 = vpack.c.bf16 %v132, %v132
    %v135 = vld [vmem:[#allocation2 + $0x78] sm:$0xff]
    %v136 = vld [vmem:[#allocation2 + $0x80] sm:$0xf]
    %v137 = vld [vmem:[#allocation2 + $0x84] sm:$0xff]
    %v138 = vld [vmem:[#allocation2 + $0x8c] sm:$0xf]
    %v139 = vld [vmem:[#allocation2 + $0x90] sm:$0xff]
    %v140 = vld [vmem:[#allocation2 + $0x98] sm:$0xf]
    %v141 = vld [vmem:[#allocation2 + $0x9c] sm:$0xff]
    %v142 = vld [vmem:[#allocation2 + $0xa4] sm:$0xf]
    %v143 = vld [vmem:[#allocation2 + $0xa8] sm:$0xff]
    %v144 = vld [vmem:[#allocation2 + $0xb0] sm:$0xf]
    %v145 = vld [vmem:[#allocation2 + $0xb4] sm:$0xff]
    %v146 = vld [vmem:[#allocation2 + $0xbc] sm:$0xf]
    %v147 = vld [vmem:[#allocation2 + $0xc0] sm:$0xff]
    %v148 = vld [vmem:[#allocation2 + $0xc8] sm:$0xf]
    %v149 = vld [vmem:[#allocation2 + $0xcc] sm:$0xff]
    %v150 = vld [vmem:[#allocation2 + $0xd4] sm:$0xf]
    %v151 = vld [vmem:[#allocation2 + $0xd8] sm:$0xff]
    %v152 = vld [vmem:[#allocation2 + $0xe0] sm:$0xf]
    %v153 = vld [vmem:[#allocation2 + $0xe4] sm:$0xff]
    %v154 = vld [vmem:[#allocation2 + $0xec] sm:$0xf]
    %v155 = vld [vmem:[#allocation2 + $0xf0] sm:$0xff]
    %v156 = vld [vmem:[#allocation2 + $0xf8] sm:$0xf]
    %v157 = vld [vmem:[#allocation2 + $0xfc] sm:$0xff]
    %v158 = vld [vmem:[#allocation2 + $0x104] sm:$0xf]
    %v159 = vld [vmem:[#allocation2 + $0x108] sm:$0xff]
    %v160 = vld [vmem:[#allocation2 + $0x110] sm:$0xf]
    %v161 = vld [vmem:[#allocation2 + $0x114] sm:$0xff]
    %v162 = vld [vmem:[#allocation2 + $0x11c] sm:$0xf]
    %v163 = vld [vmem:[#allocation2 + $0x120] sm:$0xff]
    %v164 = vld [vmem:[#allocation2 + $0x128] sm:$0xf]
    %v165 = vld [vmem:[#allocation2 + $0x12c] sm:$0xff]
    %v166 = vld [vmem:[#allocation2 + $0x134] sm:$0xf]
    %v167 = vld [vmem:[#allocation2 + $0x138] sm:$0xff]
    %v168 = vld [vmem:[#allocation2 + $0x140] sm:$0xf]
    %v169 = vld [vmem:[#allocation2 + $0x144] sm:$0xff]
    %v170 = vld [vmem:[#allocation2 + $0x14c] sm:$0xf]
    %v171 = vld [vmem:[#allocation2 + $0x150] sm:$0xff]
    %v172 = vld [vmem:[#allocation2 + $0x158] sm:$0xf]
    %v173 = vld [vmem:[#allocation2 + $0x15c] sm:$0xff]
    %v174 = vld [vmem:[#allocation2 + $0x164] sm:$0xf]
    %v175 = vld [vmem:[#allocation2 + $0x168] sm:$0xff]
    %v176 = vld [vmem:[#allocation2 + $0x170] sm:$0xf]
    %v177 = vld [vmem:[#allocation2 + $0x174] sm:$0xff]
    %v178 = vld [vmem:[#allocation2 + $0x17c] sm:$0xf]
    %v179 = vld [vmem:[#allocation2 + $0x180] sm:$0xff]
    %v180 = vld [vmem:[#allocation2 + $0x188] sm:$0xf]
    %v181 = vld [vmem:[#allocation2 + $0x18c] sm:$0xff]
    %v182 = vld [vmem:[#allocation2 + $0x194] sm:$0xf]
    %v183 = vld [vmem:[#allocation2 + $0x198] sm:$0xff]
    %v184 = vld [vmem:[#allocation2 + $0x1a0] sm:$0xf]
    %v185 = vld [vmem:[#allocation2 + $0x1a4] sm:$0xff]
    %v186 = vld [vmem:[#allocation2 + $0x1ac] sm:$0xf]
    %v187 = vld [vmem:[#allocation2 + $0x1b0] sm:$0xff]
    %v188 = vld [vmem:[#allocation2 + $0x1b8] sm:$0xf]
    %v189 = vld [vmem:[#allocation2 + $0x1bc] sm:$0xff]
    %v190 = vld [vmem:[#allocation2 + $0x1c4] sm:$0xf]
    %v191 = vld [vmem:[#allocation2 + $0x1c8] sm:$0xff]
    %v192 = vld [vmem:[#allocation2 + $0x1d0] sm:$0xf]
    %v193 = vld [vmem:[#allocation2 + $0x1d4] sm:$0xff]
    %v194 = vld [vmem:[#allocation2 + $0x1dc] sm:$0xf]
    %v195 = vld [vmem:[#allocation2 + $0x1e0] sm:$0xff]
    %v196 = vld [vmem:[#allocation2 + $0x1e8] sm:$0xf]
    %v197 = vld [vmem:[#allocation2 + $0x1ec] sm:$0xff]
    %v198 = vld [vmem:[#allocation2 + $0x1f4] sm:$0xf]
    %v199 = vld [vmem:[#allocation2 + $0x1f8] sm:$0x11]
    %v200 = vld [vmem:[#allocation2 + $0x200] sm:$0x1]
    %v201 = vunpack.c.l.bf16 %v199
    %v202 = vunpack.c.h.bf16 %v199
    %v203 = vunpack.c.l.bf16 %v200
    %v204 = vlaneseq
    %v205 = vshrl.u32 %v204, 7
    %v206 = vsub.s32 0, %v205
    %v207 = vrot.slane %v201, %v206
    %v208 = vlaneseq
    %v209 = vshrl.u32 %v208, 7
    %v210 = vsub.s32 0, %v209
    %v211 = vrot.slane %v202, %v210
    %v212 = vlaneseq
    %v213 = vshrl.u32 %v212, 7
    %v214 = vsub.s32 0, %v213
    %v215 = vrot.slane %v203, %v214
    %v280 = vunpack.c.l.b16 %v135
    %v281 = vunpack.c.h.b16 %v135
    %v282 = vunpack.c.l.b16 %v136
    %v283 = vunpack.c.l.b16 %v137
    %v284 = vunpack.c.h.b16 %v137
    %v285 = vunpack.c.l.b16 %v138
    %v286 = vunpack.c.l.b16 %v139
    %v287 = vunpack.c.h.b16 %v139
    %v288 = vunpack.c.l.b16 %v140
    %v289 = vunpack.c.l.b16 %v141
    %v290 = vunpack.c.h.b16 %v141
    %v291 = vunpack.c.l.b16 %v142
    %v292 = vunpack.c.l.b16 %v143
    %v293 = vunpack.c.h.b16 %v143
    %v294 = vunpack.c.l.b16 %v144
    %v295 = vunpack.c.l.b16 %v145
    %v296 = vunpack.c.h.b16 %v145
    %v297 = vunpack.c.l.b16 %v146
    %v298 = vunpack.c.l.b16 %v147
    %v299 = vunpack.c.h.b16 %v147
    %v300 = vunpack.c.l.b16 %v148
    %v301 = vunpack.c.l.b16 %v149
    %v302 = vunpack.c.h.b16 %v149
    %v303 = vunpack.c.l.b16 %v150
    %v304 = vunpack.c.l.b16 %v151
    %v305 = vunpack.c.h.b16 %v151
    %v306 = vunpack.c.l.b16 %v152
    %v307 = vunpack.c.l.b16 %v153
    %v308 = vunpack.c.h.b16 %v153
    %v309 = vunpack.c.l.b16 %v154
    %v310 = vunpack.c.l.b16 %v155
    %v311 = vunpack.c.h.b16 %v155
    %v312 = vunpack.c.l.b16 %v156
    %v313 = vunpack.c.l.b16 %v157
    %v314 = vunpack.c.h.b16 %v157
    %v315 = vunpack.c.l.b16 %v158
    %v316 = vunpack.c.l.b16 %v159
    %v317 = vunpack.c.h.b16 %v159
    %v318 = vunpack.c.l.b16 %v160
    %v319 = vunpack.c.l.b16 %v161
    %v320 = vunpack.c.h.b16 %v161
    %v321 = vunpack.c.l.b16 %v162
    %v322 = vunpack.c.l.b16 %v163
    %v323 = vunpack.c.h.b16 %v163
    %v324 = vunpack.c.l.b16 %v164
    %v325 = vunpack.c.l.b16 %v165
    %v326 = vunpack.c.h.b16 %v165
    %v327 = vunpack.c.l.b16 %v166
    %v328 = vunpack.c.l.b16 %v167
    %v329 = vunpack.c.h.b16 %v167
    %v330 = vunpack.c.l.b16 %v168
    %v331 = vunpack.c.l.b16 %v169
    %v332 = vunpack.c.h.b16 %v169
    %v333 = vunpack.c.l.b16 %v170
    %v334 = vunpack.c.l.b16 %v171
    %v335 = vunpack.c.h.b16 %v171
    %v336 = vunpack.c.l.b16 %v172
    %v337 = vunpack.c.l.b16 %v173
    %v338 = vunpack.c.h.b16 %v173
    %v339 = vunpack.c.l.b16 %v174
    %v340 = vunpack.c.l.b16 %v175
    %v341 = vunpack.c.h.b16 %v175
    %v342 = vunpack.c.l.b16 %v176
    %v343 = vunpack.c.l.b16 %v177
    %v344 = vunpack.c.h.b16 %v177
    %v345 = vunpack.c.l.b16 %v178
    %v346 = vunpack.c.l.b16 %v179
    %v347 = vunpack.c.h.b16 %v179
    %v348 = vunpack.c.l.b16 %v180
    %v349 = vunpack.c.l.b16 %v181
    %v350 = vunpack.c.h.b16 %v181
    %v351 = vunpack.c.l.b16 %v182
    %v352 = vunpack.c.l.b16 %v183
    %v353 = vunpack.c.h.b16 %v183
    %v354 = vunpack.c.l.b16 %v184
    %v355 = vunpack.c.l.b16 %v185
    %v356 = vunpack.c.h.b16 %v185
    %v357 = vunpack.c.l.b16 %v186
    %v358 = vunpack.c.l.b16 %v187
    %v359 = vunpack.c.h.b16 %v187
    %v360 = vunpack.c.l.b16 %v188
    %v361 = vunpack.c.l.b16 %v189
    %v362 = vunpack.c.h.b16 %v189
    %v363 = vunpack.c.l.b16 %v190
    %v364 = vunpack.c.l.b16 %v191
    %v365 = vunpack.c.h.b16 %v191
    %v366 = vunpack.c.l.b16 %v192
    %v367 = vunpack.c.l.b16 %v193
    %v368 = vunpack.c.h.b16 %v193
    %v369 = vunpack.c.l.b16 %v194
    %v370 = vunpack.c.l.b16 %v195
    %v371 = vunpack.c.h.b16 %v195
    %v372 = vunpack.c.l.b16 %v196
    %v373 = vunpack.c.l.b16 %v197
    %v374 = vunpack.c.h.b16 %v197
    %v375 = vunpack.c.l.b16 %v198
    %v376 = vpack.c.b16 %v283, %v280
    %v377 = vpack.c.b16 %v284, %v281
    %v378 = vpack.c.b16 %v285, %v282
    %v379 = vpack.c.b16 %v289, %v286
    %v380 = vpack.c.b16 %v290, %v287
    %v381 = vpack.c.b16 %v291, %v288
    %v382 = vpack.c.b16 %v295, %v292
    %v383 = vpack.c.b16 %v296, %v293
    %v384 = vpack.c.b16 %v297, %v294
    %v385 = vpack.c.b16 %v301, %v298
    %v386 = vpack.c.b16 %v302, %v299
    %v387 = vpack.c.b16 %v303, %v300
    %v388 = vpack.c.b16 %v307, %v304
    %v389 = vpack.c.b16 %v308, %v305
    %v390 = vpack.c.b16 %v309, %v306
    %v391 = vpack.c.b16 %v313, %v310
    %v392 = vpack.c.b16 %v314, %v311
    %v393 = vpack.c.b16 %v315, %v312
    %v394 = vpack.c.b16 %v319, %v316
    %v395 = vpack.c.b16 %v320, %v317
    %v396 = vpack.c.b16 %v321, %v318
    %v397 = vpack.c.b16 %v325, %v322
    %v398 = vpack.c.b16 %v326, %v323
    %v399 = vpack.c.b16 %v327, %v324
    %v400 = vpack.c.b16 %v331, %v328
    %v401 = vpack.c.b16 %v332, %v329
    %v402 = vpack.c.b16 %v333, %v330
    %v403 = vpack.c.b16 %v337, %v334
    %v404 = vpack.c.b16 %v338, %v335
    %v405 = vpack.c.b16 %v339, %v336
    %v406 = vpack.c.b16 %v343, %v340
    %v407 = vpack.c.b16 %v344, %v341
    %v408 = vpack.c.b16 %v345, %v342
    %v409 = vpack.c.b16 %v349, %v346
    %v410 = vpack.c.b16 %v350, %v347
    %v411 = vpack.c.b16 %v351, %v348
    %v412 = vpack.c.b16 %v355, %v352
    %v413 = vpack.c.b16 %v356, %v353
    %v414 = vpack.c.b16 %v357, %v354
    %v415 = vpack.c.b16 %v361, %v358
    %v416 = vpack.c.b16 %v362, %v359
    %v417 = vpack.c.b16 %v363, %v360
    %v418 = vpack.c.b16 %v367, %v364
    %v419 = vpack.c.b16 %v368, %v365
    %v420 = vpack.c.b16 %v369, %v366
    %v421 = vpack.c.b16 %v373, %v370
    %v422 = vpack.c.b16 %v374, %v371
    %v423 = vpack.c.b16 %v375, %v372
    %472 = vmatprep.subr.bf16.mxu0 %v377
    %473 = vmatpush1.bf16.msra.mxu0 %v376
    %474 = vmatprep.subr.bf16.mxu0 %v380
    %475 = vmatpush1.bf16.msra.mxu0 %v379
    %476 = vmatprep.subr.bf16.mxu0 %v383
    %477 = vmatpush1.bf16.msra.mxu0 %v382
    %478 = vmatprep.subr.bf16.mxu0 %v386
    %479 = vmatpush1.bf16.msra.mxu0 %v385
    %480 = vmatprep.subr.bf16.mxu0 %v389
    %481 = vmatpush1.bf16.msra.mxu0 %v388
    %482 = vmatprep.subr.bf16.mxu0 %v392
    %483 = vmatpush1.bf16.msra.mxu0 %v391
    %484 = vmatprep.subr.bf16.mxu0 %v395
    %485 = vmatpush1.bf16.msra.mxu0 %v394
    %486 = vmatprep.subr.bf16.mxu0 %v398
    %487 = vmatpush1.bf16.msra.mxu0 %v397
    %488 = vmatprep.subr.bf16.mxu0 %v401
    %489 = vmatpush1.bf16.msra.mxu0 %v400
    %490 = vmatprep.subr.bf16.mxu0 %v404
    %491 = vmatpush1.bf16.msra.mxu0 %v403
    %492 = vmatprep.subr.bf16.mxu0 %v407
    %493 = vmatpush1.bf16.msra.mxu0 %v406
    %494 = vmatprep.subr.bf16.mxu0 %v410
    %495 = vmatpush1.bf16.msra.mxu0 %v409
    %496 = vmatprep.subr.bf16.mxu0 %v413
    %497 = vmatpush1.bf16.msra.mxu0 %v412
    %498 = vmatprep.subr.bf16.mxu0 %v416
    %499 = vmatpush1.bf16.msra.mxu0 %v415
    %500 = vmatprep.subr.bf16.mxu0 %v419
    %501 = vmatpush1.bf16.msra.mxu0 %v418
    %502 = vmatprep.subr.bf16.mxu0 %v422
    %503 = vmatpush1.bf16.msra.mxu0 %v421
    %504 = vmatprep.mubr.bf16.mxu0 %v134
    %505 = vmatmul.mubr.bf16.gmra.mrb[0].mxu0 %v133
    %v506 = vpop.f32.mrb[0].mxu0
    %v507 = vadd.f32 %v207, %v506
    %v508 = vpop.f32.mrb[0].mxu0
    %v509 = vadd.f32 %v211, %v508
    %v510 = vpop.f32.mrb[0].mxu0
    %v511 = vpop.f32.mrb[0].mxu0
    %512 = vdwg.mxu0
    %513 = vmatprep.subr.bf16.mxu0 0
    %514 = vmatpush1.bf16.msra.mxu0 %v378
    %515 = vmatprep.subr.bf16.mxu0 0
    %516 = vmatpush1.bf16.msra.mxu0 %v381
    %517 = vmatprep.subr.bf16.mxu0 0
    %518 = vmatpush1.bf16.msra.mxu0 %v384
    %519 = vmatprep.subr.bf16.mxu0 0
    %520 = vmatpush1.bf16.msra.mxu0 %v387
    %521 = vmatprep.subr.bf16.mxu0 0
    %522 = vmatpush1.bf16.msra.mxu0 %v390
    %523 = vmatprep.subr.bf16.mxu0 0
    %524 = vmatpush1.bf16.msra.mxu0 %v393
    %525 = vmatprep.subr.bf16.mxu0 0
    %526 = vmatpush1.bf16.msra.mxu0 %v396
    %527 = vmatprep.subr.bf16.mxu0 0
    %528 = vmatpush1.bf16.msra.mxu0 %v399
    %529 = vmatprep.subr.bf16.mxu0 0
    %530 = vmatpush1.bf16.msra.mxu0 %v402
    %531 = vmatprep.subr.bf16.mxu0 0
    %532 = vmatpush1.bf16.msra.mxu0 %v405
    %533 = vmatprep.subr.bf16.mxu0 0
    %534 = vmatpush1.bf16.msra.mxu0 %v408
    %535 = vmatprep.subr.bf16.mxu0 0
    %536 = vmatpush1.bf16.msra.mxu0 %v411
    %537 = vmatprep.subr.bf16.mxu0 0
    %538 = vmatpush1.bf16.msra.mxu0 %v414
    %539 = vmatprep.subr.bf16.mxu0 0
    %540 = vmatpush1.bf16.msra.mxu0 %v417
    %541 = vmatprep.subr.bf16.mxu0 0
    %542 = vmatpush1.bf16.msra.mxu0 %v420
    %543 = vmatprep.subr.bf16.mxu0 0
    %544 = vmatpush1.bf16.msra.mxu0 %v423
    %545 = vmatprep.mubr.bf16.mxu0 %v134
    %546 = vmatmul.mubr.bf16.gmra.mrb[0].mxu0 %v133
    %v547 = vpop.f32.mrb[0].mxu0
    %v548 = vadd.f32 %v215, %v547
    %v549 = vpop.f32.mrb[0].mxu0
    %v550 = vpop.f32.mrb[0].mxu0
    %v551 = vpop.f32.mrb[0].mxu0
    %552 = vdwg.mxu0
    %v553 = vmax.f32 %v507, 0.0
    %v554 = vmax.f32 %v509, 0.0
    %v555 = vmax.f32 %v548, 0.0
    %v556 = vpack.c.bf16 %v553, %v553
    %v557 = vpack.c.bf16 %v554, %v554
    %v558 = vpack.c.bf16 %v555, %v555
    %v559 = vld [vmem:[#allocation2 + $0x210] sm:$0xf]
    %v560 = vld [vmem:[#allocation2 + $0x21c] sm:$0xf]
    %v561 = vld [vmem:[#allocation2 + $0x228] sm:$0xf]
    %v562 = vld [vmem:[#allocation2 + $0x234] sm:$0xf]
    %v563 = vld [vmem:[#allocation2 + $0x240] sm:$0xf]
    %v564 = vld [vmem:[#allocation2 + $0x24c] sm:$0xf]
    %v565 = vld [vmem:[#allocation2 + $0x258] sm:$0xf]
    %v566 = vld [vmem:[#allocation2 + $0x264] sm:$0xf]
    %v567 = vld [vmem:[#allocation2 + $0x270] sm:$0xf]
    %v568 = vld [vmem:[#allocation2 + $0x27c] sm:$0xf]
    %v569 = vld [vmem:[#allocation2 + $0x288] sm:$0xf]
    %v570 = vld [vmem:[#allocation2 + $0x294] sm:$0xf]
    %v571 = vld [vmem:[#allocation2 + $0x2a0] sm:$0xf]
    %v572 = vld [vmem:[#allocation2 + $0x2ac] sm:$0xf]
    %v573 = vld [vmem:[#allocation2 + $0x2b8] sm:$0xf]
    %v574 = vld [vmem:[#allocation2 + $0x2c4] sm:$0xf]
    %v575 = vld [vmem:[#allocation2 + $0x2d0] sm:$0xf]
    %v576 = vld [vmem:[#allocation2 + $0x2dc] sm:$0xf]
    %v577 = vld [vmem:[#allocation2 + $0x2e8] sm:$0xf]
    %v578 = vld [vmem:[#allocation2 + $0x2f4] sm:$0xf]
    %v579 = vld [vmem:[#allocation2 + $0x300] sm:$0xf]
    %v580 = vld [vmem:[#allocation2 + $0x30c] sm:$0xf]
    %v581 = vld [vmem:[#allocation2 + $0x318] sm:$0xf]
    %v582 = vld [vmem:[#allocation2 + $0x324] sm:$0xf]
    %v583 = vld [vmem:[#allocation2 + $0x330] sm:$0xf]
    %v584 = vld [vmem:[#allocation2 + $0x33c] sm:$0xf]
    %v585 = vld [vmem:[#allocation2 + $0x348] sm:$0xf]
    %v586 = vld [vmem:[#allocation2 + $0x354] sm:$0xf]
    %v587 = vld [vmem:[#allocation2 + $0x360] sm:$0xf]
    %v588 = vld [vmem:[#allocation2 + $0x36c] sm:$0xf]
    %v589 = vld [vmem:[#allocation2 + $0x378] sm:$0xf]
    %v590 = vld [vmem:[#allocation2 + $0x384] sm:$0xf]
    %v591 = vld [vmem:[#allocation2 + $0x390] sm:$0xf]
    %v592 = vld [vmem:[#allocation2 + $0x39c] sm:$0xf]
    %v593 = vld [vmem:[#allocation2 + $0x3a8] sm:$0xf]
    %v594 = vld [vmem:[#allocation2 + $0x3b4] sm:$0xf]
    %v595 = vld [vmem:[#allocation2 + $0x3c0] sm:$0xf]
    %v596 = vld [vmem:[#allocation2 + $0x3cc] sm:$0xf]
    %v597 = vld [vmem:[#allocation2 + $0x3d8] sm:$0xf]
    %v598 = vld [vmem:[#allocation2 + $0x3e4] sm:$0xf]
    %v599 = vld [vmem:[#allocation2 + $0x3f0] sm:$0xf]
    %v600 = vld [vmem:[#allocation2 + $0x3fc] sm:$0xf]
    %v601 = vld [vmem:[#allocation2 + $0x408] sm:$0xf]
    %v602 = vld [vmem:[#allocation2 + $0x414] sm:$0xf]
    %v603 = vld [vmem:[#allocation2 + $0x420] sm:$0xf]
    %v604 = vld [vmem:[#allocation2 + $0x42c] sm:$0xf]
    %v605 = vld [vmem:[#allocation2 + $0x438] sm:$0xf]
    %v606 = vld [vmem:[#allocation2 + $0x444] sm:$0xf]
    %v607 = vld [vmem:[#allocation2 + $0x450] sm:$0x1]
    %v608 = vunpack.c.l.bf16 %v607
    %v609 = vlaneseq
    %v610 = vshrl.u32 %v609, 7
    %v611 = vsub.s32 0, %v610
    %v612 = vrot.slane %v608, %v611
    %v661 = vunpack.c.l.b16 %v559
    %v662 = vunpack.c.l.b16 %v560
    %v663 = vunpack.c.l.b16 %v561
    %v664 = vunpack.c.l.b16 %v562
    %v665 = vunpack.c.l.b16 %v563
    %v666 = vunpack.c.l.b16 %v564
    %v667 = vunpack.c.l.b16 %v565
    %v668 = vunpack.c.l.b16 %v566
    %v669 = vunpack.c.l.b16 %v567
    %v670 = vunpack.c.l.b16 %v568
    %v671 = vunpack.c.l.b16 %v569
    %v672 = vunpack.c.l.b16 %v570
    %v673 = vunpack.c.l.b16 %v571
    %v674 = vunpack.c.l.b16 %v572
    %v675 = vunpack.c.l.b16 %v573
    %v676 = vunpack.c.l.b16 %v574
    %v677 = vunpack.c.l.b16 %v575
    %v678 = vunpack.c.l.b16 %v576
    %v679 = vunpack.c.l.b16 %v577
    %v680 = vunpack.c.l.b16 %v578
    %v681 = vunpack.c.l.b16 %v579
    %v682 = vunpack.c.l.b16 %v580
    %v683 = vunpack.c.l.b16 %v581
    %v684 = vunpack.c.l.b16 %v582
    %v685 = vunpack.c.l.b16 %v583
    %v686 = vunpack.c.l.b16 %v584
    %v687 = vunpack.c.l.b16 %v585
    %v688 = vunpack.c.l.b16 %v586
    %v689 = vunpack.c.l.b16 %v587
    %v690 = vunpack.c.l.b16 %v588
    %v691 = vunpack.c.l.b16 %v589
    %v692 = vunpack.c.l.b16 %v590
    %v693 = vunpack.c.l.b16 %v591
    %v694 = vunpack.c.l.b16 %v592
    %v695 = vunpack.c.l.b16 %v593
    %v696 = vunpack.c.l.b16 %v594
    %v697 = vunpack.c.l.b16 %v595
    %v698 = vunpack.c.l.b16 %v596
    %v699 = vunpack.c.l.b16 %v597
    %v700 = vunpack.c.l.b16 %v598
    %v701 = vunpack.c.l.b16 %v599
    %v702 = vunpack.c.l.b16 %v600
    %v703 = vunpack.c.l.b16 %v601
    %v704 = vunpack.c.l.b16 %v602
    %v705 = vunpack.c.l.b16 %v603
    %v706 = vunpack.c.l.b16 %v604
    %v707 = vunpack.c.l.b16 %v605
    %v708 = vunpack.c.l.b16 %v606
    %v709 = vpack.c.b16 %v662, %v661
    %v710 = vpack.c.b16 %v664, %v663
    %v711 = vpack.c.b16 %v666, %v665
    %v712 = vpack.c.b16 %v668, %v667
    %v713 = vpack.c.b16 %v670, %v669
    %v714 = vpack.c.b16 %v672, %v671
    %v715 = vpack.c.b16 %v674, %v673
    %v716 = vpack.c.b16 %v676, %v675
    %v717 = vpack.c.b16 %v678, %v677
    %v718 = vpack.c.b16 %v680, %v679
    %v719 = vpack.c.b16 %v682, %v681
    %v720 = vpack.c.b16 %v684, %v683
    %v721 = vpack.c.b16 %v686, %v685
    %v722 = vpack.c.b16 %v688, %v687
    %v723 = vpack.c.b16 %v690, %v689
    %v724 = vpack.c.b16 %v692, %v691
    %v725 = vpack.c.b16 %v694, %v693
    %v726 = vpack.c.b16 %v696, %v695
    %v727 = vpack.c.b16 %v698, %v697
    %v728 = vpack.c.b16 %v700, %v699
    %v729 = vpack.c.b16 %v702, %v701
    %v730 = vpack.c.b16 %v704, %v703
    %v731 = vpack.c.b16 %v706, %v705
    %v732 = vpack.c.b16 %v708, %v707
    %757 = vmatprep.subr.bf16.mxu0 0
    %758 = vmatpush1.bf16.msra.mxu0 %v709
    %759 = vmatprep.subr.bf16.mxu0 0
    %760 = vmatpush1.bf16.msra.mxu0 %v710
    %761 = vmatprep.subr.bf16.mxu0 0
    %762 = vmatpush1.bf16.msra.mxu0 %v711
    %763 = vmatprep.subr.bf16.mxu0 0
    %764 = vmatpush1.bf16.msra.mxu0 %v712
    %765 = vmatprep.subr.bf16.mxu0 0
    %766 = vmatpush1.bf16.msra.mxu0 %v713
    %767 = vmatprep.subr.bf16.mxu0 0
    %768 = vmatpush1.bf16.msra.mxu0 %v714
    %769 = vmatprep.subr.bf16.mxu0 0
    %770 = vmatpush1.bf16.msra.mxu0 %v715
    %771 = vmatprep.subr.bf16.mxu0 0
    %772 = vmatpush1.bf16.msra.mxu0 %v716
    %773 = vmatprep.subr.bf16.mxu0 0
    %774 = vmatpush1.bf16.msra.mxu0 %v717
    %775 = vmatprep.subr.bf16.mxu0 0
    %776 = vmatpush1.bf16.msra.mxu0 %v718
    %777 = vmatprep.subr.bf16.mxu0 0
    %778 = vmatpush1.bf16.msra.mxu0 %v719
    %779 = vmatprep.subr.bf16.mxu0 0
    %780 = vmatpush1.bf16.msra.mxu0 %v720
    %781 = vmatprep.subr.bf16.mxu0 0
    %782 = vmatpush1.bf16.msra.mxu0 %v721
    %783 = vmatprep.subr.bf16.mxu0 0
    %784 = vmatpush1.bf16.msra.mxu0 %v722
    %785 = vmatprep.subr.bf16.mxu0 0
    %786 = vmatpush1.bf16.msra.mxu0 %v723
    %787 = vmatprep.subr.bf16.mxu0 0
    %788 = vmatpush1.bf16.msra.mxu0 %v724
    %789 = vmatprep.mubr.bf16.mxu0 %v557
    %790 = vmatmul.mubr.bf16.gmra.mrb[0].mxu0 %v556
    %v791 = vpop.f32.mrb[0].mxu0
    %v792 = vadd.f32 %v612, %v791
    %v793 = vpop.f32.mrb[0].mxu0
    %v794 = vpop.f32.mrb[0].mxu0
    %v795 = vpop.f32.mrb[0].mxu0
    %796 = vdwg.mxu0
    %797 = vmatprep.subr.bf16.mxu0 0
    %798 = vmatpush1.bf16.msra.mxu0 %v725
    %799 = vmatprep.subr.bf16.mxu0 0
    %800 = vmatpush1.bf16.msra.mxu0 %v726
    %801 = vmatprep.subr.bf16.mxu0 0
    %802 = vmatpush1.bf16.msra.mxu0 %v727
    %803 = vmatprep.subr.bf16.mxu0 0
    %804 = vmatpush1.bf16.msra.mxu0 %v728
    %805 = vmatprep.subr.bf16.mxu0 0
    %806 = vmatpush1.bf16.msra.mxu0 %v729
    %807 = vmatprep.subr.bf16.mxu0 0
    %808 = vmatpush1.bf16.msra.mxu0 %v730
    %809 = vmatprep.subr.bf16.mxu0 0
    %810 = vmatpush1.bf16.msra.mxu0 %v731
    %811 = vmatprep.subr.bf16.mxu0 0
    %812 = vmatpush1.bf16.msra.mxu0 %v732
    %813 = vmatprep.subr.bf16.mxu0 0
    %814 = vmatpush1.bf16.msra.mxu0 0
    %815 = vmatprep.subr.bf16.mxu0 0
    %816 = vmatpush1.bf16.msra.mxu0 0
    %817 = vmatprep.subr.bf16.mxu0 0
    %818 = vmatpush1.bf16.msra.mxu0 0
    %819 = vmatprep.subr.bf16.mxu0 0
    %820 = vmatpush1.bf16.msra.mxu0 0
    %821 = vmatprep.subr.bf16.mxu0 0
    %822 = vmatpush1.bf16.msra.mxu0 0
    %823 = vmatprep.subr.bf16.mxu0 0
    %824 = vmatpush1.bf16.msra.mxu0 0
    %825 = vmatprep.subr.bf16.mxu0 0
    %826 = vmatpush1.bf16.msra.mxu0 0
    %827 = vmatprep.subr.bf16.mxu0 0
    %828 = vmatpush1.bf16.msra.mxu0 0
    %829 = vmatprep.mubr.bf16.mxu0 0
    %830 = vmatmul.mubr.bf16.gmra.mrb[0].mxu0 %v558
    %v831 = vpop.f32.mrb[0].mxu0
    %v832 = vadd.f32 %v792, %v831
    %v833 = vpop.f32.mrb[0].mxu0
    %v834 = vpop.f32.mrb[0].mxu0
    %v835 = vpop.f32.mrb[0].mxu0
    %836 = vdwg.mxu0
    %v837 = vmax.f32 %v832, 0.0
    %v838 = vpack.c.bf16 %v837, %v837
    %v839 = vld [vmem:[#allocation2 + $0x468] sm:$0xf]
    %v840 = vld [vmem:[#allocation2 + $0x474] sm:$0xf]
    %v841 = vld [vmem:[#allocation2 + $0x480] sm:$0xf]
    %v842 = vld [vmem:[#allocation2 + $0x48c] sm:$0xf]
    %v843 = vld [vmem:[#allocation2 + $0x498] sm:$0xf]
    %v844 = vld [vmem:[#allocation2 + $0x4a4] sm:$0xf]
    %v845 = vld [vmem:[#allocation2 + $0x4b0] sm:$0xf]
    %v846 = vld [vmem:[#allocation2 + $0x4bc] sm:$0xf]
    %v847 = vld [vmem:[#allocation2 + $0x4c8] sm:$0xf]
    %v848 = vld [vmem:[#allocation2 + $0x4d4] sm:$0xf]
    %v849 = vld [vmem:[#allocation2 + $0x4e0] sm:$0xf]
    %v850 = vld [vmem:[#allocation2 + $0x4ec] sm:$0xf]
    %v851 = vld [vmem:[#allocation2 + $0x4f8] sm:$0xf]
    %v852 = vld [vmem:[#allocation2 + $0x504] sm:$0xf]
    %v853 = vld [vmem:[#allocation2 + $0x510] sm:$0xf]
    %v854 = vld [vmem:[#allocation2 + $0x51c] sm:$0xf]
    %v855 = vld [vmem:[#allocation2 + $0x528] sm:$0x1]
    %v856 = vunpack.c.l.bf16 %v855
    %v857 = vlaneseq
    %v858 = vshrl.u32 %v857, 7
    %v859 = vsub.s32 0, %v858
    %v860 = vrot.slane %v856, %v859
    %v877 = vunpack.c.l.b16 %v839
    %v878 = vunpack.c.l.b16 %v840
    %v879 = vunpack.c.l.b16 %v841
    %v880 = vunpack.c.l.b16 %v842
    %v881 = vunpack.c.l.b16 %v843
    %v882 = vunpack.c.l.b16 %v844
    %v883 = vunpack.c.l.b16 %v845
    %v884 = vunpack.c.l.b16 %v846
    %v885 = vunpack.c.l.b16 %v847
    %v886 = vunpack.c.l.b16 %v848
    %v887 = vunpack.c.l.b16 %v849
    %v888 = vunpack.c.l.b16 %v850
    %v889 = vunpack.c.l.b16 %v851
    %v890 = vunpack.c.l.b16 %v852
    %v891 = vunpack.c.l.b16 %v853
    %v892 = vunpack.c.l.b16 %v854
    %v893 = vpack.c.b16 %v878, %v877
    %v894 = vpack.c.b16 %v880, %v879
    %v895 = vpack.c.b16 %v882, %v881
    %v896 = vpack.c.b16 %v884, %v883
    %v897 = vpack.c.b16 %v886, %v885
    %v898 = vpack.c.b16 %v888, %v887
    %v899 = vpack.c.b16 %v890, %v889
    %v900 = vpack.c.b16 %v892, %v891
    %909 = vmatprep.subr.bf16.mxu0 0
    %910 = vmatpush1.bf16.msra.mxu0 %v893
    %911 = vmatprep.subr.bf16.mxu0 0
    %912 = vmatpush1.bf16.msra.mxu0 %v894
    %913 = vmatprep.subr.bf16.mxu0 0
    %914 = vmatpush1.bf16.msra.mxu0 %v895
    %915 = vmatprep.subr.bf16.mxu0 0
    %916 = vmatpush1.bf16.msra.mxu0 %v896
    %917 = vmatprep.subr.bf16.mxu0 0
    %918 = vmatpush1.bf16.msra.mxu0 %v897
    %919 = vmatprep.subr.bf16.mxu0 0
    %920 = vmatpush1.bf16.msra.mxu0 %v898
    %921 = vmatprep.subr.bf16.mxu0 0
    %922 = vmatpush1.bf16.msra.mxu0 %v899
    %923 = vmatprep.subr.bf16.mxu0 0
    %924 = vmatpush1.bf16.msra.mxu0 %v900
    %925 = vmatprep.subr.bf16.mxu0 0
    %926 = vmatpush1.bf16.msra.mxu0 0
    %927 = vmatprep.subr.bf16.mxu0 0
    %928 = vmatpush1.bf16.msra.mxu0 0
    %929 = vmatprep.subr.bf16.mxu0 0
    %930 = vmatpush1.bf16.msra.mxu0 0
    %931 = vmatprep.subr.bf16.mxu0 0
    %932 = vmatpush1.bf16.msra.mxu0 0
    %933 = vmatprep.subr.bf16.mxu0 0
    %934 = vmatpush1.bf16.msra.mxu0 0
    %935 = vmatprep.subr.bf16.mxu0 0
    %936 = vmatpush1.bf16.msra.mxu0 0
    %937 = vmatprep.subr.bf16.mxu0 0
    %938 = vmatpush1.bf16.msra.mxu0 0
    %939 = vmatprep.subr.bf16.mxu0 0
    %940 = vmatpush1.bf16.msra.mxu0 0
    %941 = vmatprep.mubr.bf16.mxu0 0
    %942 = vmatmul.mubr.bf16.gmra.mrb[0].mxu0 %v838
    %v943 = vpop.f32.mrb[0].mxu0
    %v944 = vadd.f32 %v860, %v943
    %v945 = vpop.f32.mrb[0].mxu0
    %v946 = vpop.f32.mrb[0].mxu0
    %v947 = vpop.f32.mrb[0].mxu0
    %948 = vdwg.mxu0
    %v949 = vpack.c.bf16 %v944, %v944
    %950 = vst [vmem:[%s2] sm:$0xf] %v949
    // Predicated region
    $region14: #{stock_cnn_forward.1} parent=1 // pred_check
      _
    $region15: #{stock_cnn_forward.1} parent=1 // pred_check_branch
      %952 = sbr.rel (0) target = $region17
    $region16: #{stock_cnn_forward.1} parent=1 // pred_region
      _
    $region17: #{stock_cnn_forward.1} parent=1 // pred_fallthru
      _
    // Predicated region
    $region18: #{stock_cnn_forward.1} parent=1 // pred_check
      _
    $region19: #{stock_cnn_forward.1} parent=1 // pred_check_branch
      %954 = sbr.rel (0) target = $region21
    $region20: #{stock_cnn_forward.1} parent=1 // pred_region
      _
    $region21: #{stock_cnn_forward.1} parent=1 // pred_fallthru
      _
    %955 = vsyncpa [#allocation3], 1

</llo_original>
